<compile_context>
chip_gen: v7x
topology: tpu7x:2x2x1
jax: 0.10.0
libtpu: 0.0.40
codegen_flags: <defaults>
</compile_context>

<pallas_src>
import functools
import math

import jax
import jax.numpy as jnp
from jax.experimental import pallas as pl
from jax.experimental.pallas import tpu as pltpu


def _dice_kernel(x_ref, t_ref, out_ref, inter_acc, denom_acc, *, hw, has_tail):
    # x_ref, t_ref : (R, T) tile of rows (= flattened (n, c)) x spatial lanes.
    # out_ref      : (R, 1) per-row dice, written on the last HW tile.
    # inter_acc    : (R, 1) f32 running sum of probs * target.
    # denom_acc    : (R, 1) f32 running sum of probs + target.
    h = pl.program_id(1)
    n_tiles = pl.num_programs(1)

    @pl.when(h == 0)
    def _init():
        inter_acc[...] = jnp.zeros_like(inter_acc)
        denom_acc[...] = jnp.zeros_like(denom_acc)

    x = x_ref[...].astype(jnp.float32)            # (R, T)
    t = t_ref[...].astype(jnp.float32)            # (R, T)

    # sigmoid(x) == 0.5 * (tanh(0.5 * x) + 1): single EUP transcendental.
    probs = 0.5 * (jnp.tanh(0.5 * x) + 1.0)

    def _accumulate(p, tt):
        inter_acc[...] += jnp.sum(p * tt, axis=1, keepdims=True)
        denom_acc[...] += jnp.sum(p + tt, axis=1, keepdims=True)

    if not has_tail:
        # HW is an exact multiple of the tile: no masking anywhere.
        _accumulate(probs, t)
    else:
        @pl.when(h < n_tiles - 1)
        def _full_tile():
            _accumulate(probs, t)

        @pl.when(h == n_tiles - 1)
        def _tail_tile():
            tile = probs.shape[1]
            lane = jax.lax.broadcasted_iota(jnp.int32, probs.shape, 1)
            valid = (h * tile + lane) < hw
            _accumulate(jnp.where(valid, probs, 0.0),
                        jnp.where(valid, t, 0.0))

    @pl.when(h == n_tiles - 1)
    def _finalize():
        smooth = jnp.float32(1.0)
        out_ref[...] = 2.0 * (inter_acc[...] + smooth) / (denom_acc[...] + smooth)


def _pick_tiles(rows, hw, bytes_per_elem_both):
    """Chip-aware block sizing: keep 2 operands x 2 pipeline buffers within
    ~half of VMEM, fill sublanes with rows, and prefer the full HW extent."""
    try:
        vmem_cap = int(pltpu.get_tpu_info().vmem_capacity_bytes)
    except Exception:
        vmem_cap = 64 << 20                      # safe for v5e/v6e/v7x
    budget = vmem_cap // 2                       # headroom for scratch/output/etc.

    if rows < 16:
        row_block = rows                         # full extent (always legal)
    else:
        # >=2 row blocks (megacore sharding on v7x), multiple of 8, capped.
        row_block = min(1024, ((rows + 15) // 16) * 8)

    per_lane_bytes = 2 * row_block * bytes_per_elem_both   # x2 double buffer
    if hw * per_lane_bytes <= budget:
        tile = hw
    else:
        tile = max(128, (budget // per_lane_bytes // 128) * 128)
        tile = min(tile, hw)
    return row_block, tile, vmem_cap


def multiclass_dice_loss(inp, target, weights=None, *, compact_target=True,
                         max_tile_lanes=None):
    """inp, target: (N, C, *spatial). Returns scalar f32 loss, matching the
    PyTorch MulticlassDiceLoss.forward.

    compact_target: stream the target as bf16 (exact for the one-hot / binary
    targets this module requires), halving its HBM traffic.
    max_tile_lanes: optional cap on the HW tile (testing / tuning knob)."""
    assert inp.shape == target.shape
    N, C = int(inp.shape[0]), int(inp.shape[1])
    HW = int(math.prod(inp.shape[2:]))
    rows = N * C

    # Free, contiguous views of the NCHW inputs: no HBM transpose.
    x = inp.reshape(rows, HW)
    t = target.reshape(rows, HW)
    if compact_target and t.dtype == jnp.float32:
        t = t.astype(jnp.bfloat16)               # exact for one-hot targets

    x_bytes = jnp.dtype(x.dtype).itemsize
    t_bytes = jnp.dtype(t.dtype).itemsize

    row_block, tile, vmem_cap = _pick_tiles(rows, HW, x_bytes + t_bytes)
    if max_tile_lanes is not None:
        forced = max(128, (int(max_tile_lanes) // 128) * 128)
        tile = min(tile, forced)
        if tile > HW:
            tile = HW

    n_row_blocks = pl.cdiv(rows, row_block)
    n_hw_tiles = pl.cdiv(HW, tile)
    has_tail = (HW % tile) != 0

    per_step_bytes = row_block * tile * (x_bytes + t_bytes)
    vmem_limit = int(min(vmem_cap * 3 // 4,
                         max(32 << 20, 2 * per_step_bytes + (8 << 20))))

    cost = pl.CostEstimate(
        flops=10 * rows * HW,
        transcendentals=rows * HW,
        bytes_accessed=rows * HW * (x_bytes + t_bytes) + rows * 4,
    )

    dice = pl.pallas_call(
        functools.partial(_dice_kernel, hw=HW, has_tail=has_tail),
        out_shape=jax.ShapeDtypeStruct((rows, 1), jnp.float32),
        grid=(n_row_blocks, n_hw_tiles),
        in_specs=[
            pl.BlockSpec((row_block, tile), lambda r, h: (r, h)),
            pl.BlockSpec((row_block, tile), lambda r, h: (r, h)),
        ],
        out_specs=pl.BlockSpec((row_block, 1), lambda r, h: (r, 0)),
        scratch_shapes=[
            pltpu.VMEM((row_block, 1), jnp.float32),
            pltpu.VMEM((row_block, 1), jnp.float32),
        ],
        compiler_params=pltpu.CompilerParams(
            dimension_semantics=("parallel", "arbitrary"),
            vmem_limit_bytes=vmem_limit,
        ),
        cost_estimate=cost,
    )(x, t)                                                    # (rows, 1)

    dice = dice[:, 0].reshape(N, C)                            # row = n*C + c
    per_class = 1.0 - jnp.sum(dice, axis=0) / jnp.float32(N)   # (C,)
    if weights is not None:
        per_class = per_class * jnp.asarray(weights, jnp.float32)
    return jnp.sum(per_class)


def _reference(inp, target, weights=None):
    # Pure-JAX reference mirroring the PyTorch code.
    N, C = inp.shape[0], inp.shape[1]
    total = jnp.float32(0.0)
    for c in range(C):
        probs = jax.nn.sigmoid(inp[:, c].astype(jnp.float32)).reshape(N, -1)
        m2 = target[:, c].astype(jnp.float32).reshape(N, -1)
        inter = jnp.sum(probs * m2, axis=1)
        dice = 2.0 * (inter + 1.0) / (jnp.sum(probs, axis=1) + jnp.sum(m2, axis=1) + 1.0)
        loss_c = 1.0 - jnp.sum(dice) / N
        if weights is not None:
            loss_c = loss_c * weights[c]
        total = total + loss_c
    return total


def _make_inputs(key, N, C, H, W):
    k1, k2 = jax.random.split(key)
    x = jax.random.normal(k1, (N, C, H, W), dtype=jnp.float32)
    cls = jax.random.randint(k2, (N, H, W), 0, C)
    tgt = jax.nn.one_hot(cls, C, dtype=jnp.float32).transpose(0, 3, 1, 2)  # (N,C,H,W)
    return x, tgt


if __name__ == "__main__":
    key = jax.random.PRNGKey(0)
    k_a, k_b, k_c = jax.random.split(key, 3)

    # Case 1: small shape, full-HW tile, full row block (rows = 8).
    x1, t1 = _make_inputs(k_a, N=2, C=4, H=16, W=16)
    loss1 = jax.block_until_ready(multiclass_dice_loss(x1, t1))
    ref1 = jax.block_until_ready(_reference(x1, t1))
    assert jnp.allclose(loss1, ref1, rtol=1e-5, atol=1e-4), (loss1, ref1)

    # Case 2: weighted path, rows = 6 (not a multiple of 8 -> full-row block).
    x2, t2 = _make_inputs(k_b, N=2, C=3, H=48, W=48)
    w2 = jnp.array([0.2, 0.5, 0.3], jnp.float32)
    loss2 = jax.block_until_ready(multiclass_dice_loss(x2, t2, weights=w2))
    ref2 = jax.block_until_ready(_reference(x2, t2, weights=w2))
    assert jnp.allclose(loss2, ref2, rtol=1e-5, atol=1e-4), (loss2, ref2)

    # Case 3: force a 128-lane HW tile on HW=400 to exercise multi-tile
    # accumulation and the masked-tail (pl.when) path.
    x3, t3 = _make_inputs(k_c, N=2, C=4, H=20, W=20)
    loss3 = jax.block_until_ready(multiclass_dice_loss(x3, t3, max_tile_lanes=128))
    ref3 = jax.block_until_ready(_reference(x3, t3))
    assert jnp.allclose(loss3, ref3, rtol=1e-5, atol=1e-4), (loss3, ref3)

    print("KERNEL_OK")
</pallas_src>

<mosaic_0001>
module attributes {stable_mosaic.version = 11 : i64} {
  func.func @_dice_kernel(%arg0: i32, %arg1: i32, %arg2: memref<8x256xf32, #tpu.memory_space<vmem>>, %arg3: memref<8x256xbf16, #tpu.memory_space<vmem>>, %arg4: memref<8x1xf32, #tpu.memory_space<vmem>>, %arg5: memref<8x1xf32, #tpu.memory_space<vmem>>, %arg6: memref<8x1xf32, #tpu.memory_space<vmem>>) attributes {dimension_semantics = [#tpu.dimension_semantics<parallel>, #tpu.dimension_semantics<arbitrary>], iteration_bounds = array<i64: 1, 1>, scalar_prefetch = 0 : i64, scratch_operands = 2 : i64, tpu.core_type = #tpu.core_type<tc>, window_params = [{transform_indices = @transform_0, window_bounds = array<i64: 8, 256>}, {transform_indices = @transform_1, window_bounds = array<i64: 8, 256>}, {transform_indices = @transform_2, window_bounds = array<i64: 8, 1>}]} {
    %c0_i32 = arith.constant 0 : i32
    %0 = arith.cmpi eq, %arg1, %c0_i32 : i32
    %1 = arith.extui %0 : i1 to i32
    %c0_i32_0 = arith.constant 0 : i32
    %2 = arith.cmpi ne, %1, %c0_i32_0 : i32
    scf.if %2 {
      %cst_18 = arith.constant 0.000000e+00 : f32
      %28 = vector.broadcast %cst_18 : f32 to vector<8x1xf32>
      %c0_19 = arith.constant 0 : index
      %c0_20 = arith.constant 0 : index
      %29 = vector.load %arg5[%c0_19, %c0_20] : memref<8x1xf32, #tpu.memory_space<vmem>>, vector<8x1xf32>
      tpu.vector_store %arg5[%c0_19, %c0_20], %28 {strides = array<i32>} : memref<8x1xf32, #tpu.memory_space<vmem>>, vector<8x1xf32>,
      %cst_21 = arith.constant 0.000000e+00 : f32
      %30 = vector.broadcast %cst_21 : f32 to vector<8x1xf32>
      %c0_22 = arith.constant 0 : index
      %c0_23 = arith.constant 0 : index
      %31 = vector.load %arg6[%c0_22, %c0_23] : memref<8x1xf32, #tpu.memory_space<vmem>>, vector<8x1xf32>
      tpu.vector_store %arg6[%c0_22, %c0_23], %30 {strides = array<i32>} : memref<8x1xf32, #tpu.memory_space<vmem>>, vector<8x1xf32>,
    } else {
    }
    %c0 = arith.constant 0 : index
    %c0_1 = arith.constant 0 : index
    %3 = vector.load %arg2[%c0, %c0_1] : memref<8x256xf32, #tpu.memory_space<vmem>>, vector<8x256xf32>
    %c0_2 = arith.constant 0 : index
    %c0_3 = arith.constant 0 : index
    %4 = vector.load %arg3[%c0_2, %c0_3] : memref<8x256xbf16, #tpu.memory_space<vmem>>, vector<8x256xbf16>
    %5 = arith.extf %4 : vector<8x256xbf16> to vector<8x256xf32>
    %cst = arith.constant 5.000000e-01 : f32
    %6 = vector.broadcast %cst : f32 to vector<8x256xf32>
    %7 = arith.mulf %6, %3 : vector<8x256xf32>
    %8 = math.tanh %7 : vector<8x256xf32>
    %cst_4 = arith.constant 1.000000e+00 : f32
    %9 = vector.broadcast %cst_4 : f32 to vector<8x256xf32>
    %10 = arith.addf %8, %9 : vector<8x256xf32>
    %cst_5 = arith.constant 5.000000e-01 : f32
    %11 = vector.broadcast %cst_5 : f32 to vector<8x256xf32>
    %12 = arith.mulf %11, %10 : vector<8x256xf32>
    %c0_6 = arith.constant 0 : index
    %c0_7 = arith.constant 0 : index
    %13 = vector.load %arg5[%c0_6, %c0_7] : memref<8x1xf32, #tpu.memory_space<vmem>>, vector<8x1xf32>
    %14 = arith.mulf %12, %5 : vector<8x256xf32>
    %cst_8 = arith.constant dense<0.000000e+00> : vector<8xf32>
    %15 = vector.multi_reduction <add>, %14, %cst_8 [1] : vector<8x256xf32> to vector<8xf32>
    %16 = vector.shape_cast %15 : vector<8xf32> to vector<8x1xf32>
    %17 = arith.addf %13, %16 : vector<8x1xf32>
    %c0_9 = arith.constant 0 : index
    %c0_10 = arith.constant 0 : index
    %18 = vector.load %arg5[%c0_9, %c0_10] : memref<8x1xf32, #tpu.memory_space<vmem>>, vector<8x1xf32>
    tpu.vector_store %arg5[%c0_9, %c0_10], %17 {strides = array<i32>} : memref<8x1xf32, #tpu.memory_space<vmem>>, vector<8x1xf32>,
    %c0_11 = arith.constant 0 : index
    %c0_12 = arith.constant 0 : index
    %19 = vector.load %arg6[%c0_11, %c0_12] : memref<8x1xf32, #tpu.memory_space<vmem>>, vector<8x1xf32>
    %20 = arith.addf %12, %5 : vector<8x256xf32>
    %cst_13 = arith.constant dense<0.000000e+00> : vector<8xf32>
    %21 = vector.multi_reduction <add>, %20, %cst_13 [1] : vector<8x256xf32> to vector<8xf32>
    %22 = vector.shape_cast %21 : vector<8xf32> to vector<8x1xf32>
    %23 = arith.addf %19, %22 : vector<8x1xf32>
    %c0_14 = arith.constant 0 : index
    %c0_15 = arith.constant 0 : index
    %24 = vector.load %arg6[%c0_14, %c0_15] : memref<8x1xf32, #tpu.memory_space<vmem>>, vector<8x1xf32>
    tpu.vector_store %arg6[%c0_14, %c0_15], %23 {strides = array<i32>} : memref<8x1xf32, #tpu.memory_space<vmem>>, vector<8x1xf32>,
    %c0_i32_16 = arith.constant 0 : i32
    %25 = arith.cmpi eq, %arg1, %c0_i32_16 : i32
    %26 = arith.extui %25 : i1 to i32
    %c0_i32_17 = arith.constant 0 : i32
    %27 = arith.cmpi ne, %26, %c0_i32_17 : i32
    scf.if %27 {
      %c0_18 = arith.constant 0 : index
      %c0_19 = arith.constant 0 : index
      %28 = vector.load %arg5[%c0_18, %c0_19] : memref<8x1xf32, #tpu.memory_space<vmem>>, vector<8x1xf32>
      %cst_20 = arith.constant 1.000000e+00 : f32
      %29 = vector.broadcast %cst_20 : f32 to vector<8x1xf32>
      %30 = arith.addf %28, %29 : vector<8x1xf32>
      %cst_21 = arith.constant 2.000000e+00 : f32
      %31 = vector.broadcast %cst_21 : f32 to vector<8x1xf32>
      %32 = arith.mulf %31, %30 : vector<8x1xf32>
      %c0_22 = arith.constant 0 : index
      %c0_23 = arith.constant 0 : index
      %33 = vector.load %arg6[%c0_22, %c0_23] : memref<8x1xf32, #tpu.memory_space<vmem>>, vector<8x1xf32>
      %cst_24 = arith.constant 1.000000e+00 : f32
      %34 = vector.broadcast %cst_24 : f32 to vector<8x1xf32>
      %35 = arith.addf %33, %34 : vector<8x1xf32>
      %36 = arith.divf %32, %35 : vector<8x1xf32>
      %c0_25 = arith.constant 0 : index
      %c0_26 = arith.constant 0 : index
      %37 = vector.load %arg4[%c0_25, %c0_26] : memref<8x1xf32, #tpu.memory_space<vmem>>, vector<8x1xf32>
      tpu.vector_store %arg4[%c0_25, %c0_26], %36 {strides = array<i32>} : memref<8x1xf32, #tpu.memory_space<vmem>>, vector<8x1xf32>,
    } else {
    }
    return
  }
  func.func @transform_0(%arg0: i32, %arg1: i32) -> (i32, i32) {
    %c0_i32 = arith.constant 0 : i32
    return %arg0, %arg1 : i32, i32
  }
  func.func @transform_1(%arg0: i32, %arg1: i32) -> (i32, i32) {
    %c0_i32 = arith.constant 0 : i32
    return %arg0, %arg1 : i32, i32
  }
  func.func @transform_2(%arg0: i32, %arg1: i32) -> (i32, i32) {
    %c0_i32 = arith.constant 0 : i32
    %c0_i32_0 = arith.constant 0 : i32
    return %arg0, %c0_i32 : i32, i32
  }
}

</mosaic_0001>

<llo_original>
// kernel: tpu_custom_call.1
$region0: #{tpu_custom_call.1}
  #allocation0 [shape = 'u32[]', space=smem, size = 0x4, offset = 0x4, fixed_abs, tag = 'smem constant byte address 0x4 - core index']
  #allocation1 [shape = 'u32[144,128]{1,0:T(1,128)}', space=vmem, size = 0x12000, scoped, tag = 'internal scratch']
  #allocation2 [shape = 'f32[8,1]{1,0:T(8,128)}', space=vmem, size = 0x1000, scoped, tag = 'scratch operand']
  #allocation3 [shape = 'f32[8,1]{1,0:T(8,128)}', space=vmem, size = 0x1000, scoped, tag = 'scratch operand']
  %s0 = inlined_call_operand.hbm [shape: f32[8,256], index: 0, kind: input, shape index: {}]
  %s1 = inlined_call_operand.hbm [shape: bf16[8,256], index: 1, kind: input, shape index: {}]
  %s2 = inlined_call_operand.vmem [shape: f32[8,1], index: 2, kind: output, shape index: {}]
  %s3 = sld [smem:[#allocation0]]
  $region34: #{tpu_custom_call.1} parent=0
    _
  %s5 = ssub.s32 1, %s3
  %s6 = scalar_select 0, %s5, %s3
  $region1: #{tpu_custom_call.1} parent=0
    #allocation4 [shape = 'u8[8192]{0}', space=vmem, size = 0x2000, scoped, tag = 'input window, operand 0, single buffered']
    #allocation5 [shape = 's32[1]{0}', space=sflag, size = 0x4, scoped, tag = 'scoped memory for tpu_custom_call.1']
    #allocation6 [shape = 'u8[4096]{0}', space=vmem, size = 0x1000, scoped, tag = 'input window, operand 1, single buffered']
    #allocation7 [shape = 's32[1]{0}', space=sflag, size = 0x4, scoped, tag = 'scoped memory for tpu_custom_call.1']
    %7 = vsyncpa [#allocation5], 0
    %8 = vsyncpa [#allocation7], 0
    // Predicated region
    $region2: #{tpu_custom_call.1} parent=1 // pred_check
      _
    $region3: #{tpu_custom_call.1} parent=1 // pred_check_branch
      %10 = sbr.rel (0) target = $region5
    $region4: #{tpu_custom_call.1} parent=1 // pred_region
      %s12 = ssub.s32 256, 256
      %13 = vsyncadd [#allocation5], %s12
      %s15 = sshll.u32 [#allocation4], 4
      %s16 = int_to_ptr.vmem [resolvable:$true] %s15
      %18 = dma.hbm_to_vmem [thread:$0]  %s0, 256, %s16, [#allocation5]
    $region5: #{tpu_custom_call.1} parent=1 // pred_fallthru
      _
    // Predicated region
    $region6: #{tpu_custom_call.1} parent=1 // pred_check
      _
    $region7: #{tpu_custom_call.1} parent=1 // pred_check_branch
      %20 = sbr.rel (0) target = $region9
    $region8: #{tpu_custom_call.1} parent=1 // pred_region
      %s22 = ssub.s32 128, 128
      %23 = vsyncadd [#allocation7], %s22
      %s25 = sshll.u32 [#allocation6], 4
      %s26 = int_to_ptr.vmem [resolvable:$true] %s25
      %28 = dma.hbm_to_vmem [thread:$0]  %s1, 128, %s26, [#allocation7]
    $region9: #{tpu_custom_call.1} parent=1 // pred_fallthru
      _
    // Predicated region
    $region10: #{tpu_custom_call.1} parent=1 // pred_check
      _
    $region11: #{tpu_custom_call.1} parent=1 // pred_check_branch
      %30 = sbr.rel (0) target = $region13
    $region12: #{tpu_custom_call.1} parent=1 // pred_region
      %31 = dma.done [#allocation5], 256
    $region13: #{tpu_custom_call.1} parent=1 // pred_fallthru
      _
    // Predicated region
    $region14: #{tpu_custom_call.1} parent=1 // pred_check
      _
    $region15: #{tpu_custom_call.1} parent=1 // pred_check_branch
      %33 = sbr.rel (0) target = $region17
    $region16: #{tpu_custom_call.1} parent=1 // pred_region
      %34 = dma.done [#allocation7], 128
    $region17: #{tpu_custom_call.1} parent=1 // pred_fallthru
      _
    %p35 = scmp.eq.s32.totalorder 0, 0
    // Predicated region
    $region18: #{tpu_custom_call.1} parent=1 // pred_check
      %p36 = pneg %p35
    $region19: #{tpu_custom_call.1} parent=1 // pred_check_branch
      %38 = sbr.rel (%p36) target = $region21
    $region20: #{tpu_custom_call.1} parent=1 // pred_region
      %vm39 = vcmask 7168
      %40 = vst.msk [vmem:[#allocation2] sm:$0xff] %vm39, 0.0
      %41 = vst.msk [vmem:[#allocation3] sm:$0xff] %vm39, 0.0
    $region21: #{tpu_custom_call.1} parent=1 // pred_fallthru
      _
    %v42 = vld [vmem:[#allocation4] sm:$0xff]
    %v43 = vld [vmem:[#allocation4 + $0x8] sm:$0xff]
    %v44 = vld [vmem:[#allocation6] sm:$0xff]
    %v45 = vunpack.c.l.bf16 %v44
    %v46 = vunpack.c.h.bf16 %v44
    %v47 = vmul.f32 %v42, 0.5
    %v48 = vmul.f32 %v43, 0.5
    %v49 = vtanh.pop %v47
    %v50 = vtanh.pop %v48
    %v51 = vadd.f32 %v49, 1.0
    %v52 = vadd.f32 %v50, 1.0
    %v53 = vmul.f32 %v51, 0.5
    %v54 = vmul.f32 %v52, 0.5
    %v55 = vld [vmem:[#allocation2] sm:$0xff]
    %v56 = vmul.f32 %v53, %v45
    %v57 = vmul.f32 %v54, %v46
    %v58 = vadd.f32 %v56, %v57
    %59 = vadd.xlane.f32.xlu0 %v58
    %v60 = vpop.xlane.xlu0 %59
    %v61 = vadd.f32 %v55, %v60
    %vm62 = vcmask 7168
    %63 = vst.msk [vmem:[#allocation2] sm:$0xff] %vm62, %v61
    %v64 = vld [vmem:[#allocation3] sm:$0xff]
    %v65 = vadd.f32 %v53, %v45
    %v66 = vadd.f32 %v54, %v46
    %v67 = vadd.f32 %v65, %v66
    %68 = vadd.xlane.f32.xlu0 %v67
    %v69 = vpop.xlane.xlu0 %68
    %v70 = vadd.f32 %v64, %v69
    %71 = vst.msk [vmem:[#allocation3] sm:$0xff] %vm62, %v70
    // Predicated region
    $region22: #{tpu_custom_call.1} parent=1 // pred_check
      %p72 = pneg %p35
    $region23: #{tpu_custom_call.1} parent=1 // pred_check_branch
      %74 = sbr.rel (%p72) target = $region25
    $region24: #{tpu_custom_call.1} parent=1 // pred_region
      %v75 = vld [vmem:[#allocation2] sm:$0xff]
      %v76 = vadd.f32 %v75, 1.0
      %v77 = vmul.f32 %v76, 2.0
      %v78 = vld [vmem:[#allocation3] sm:$0xff]
      %v79 = vadd.f32 %v78, 1.0
      %v80 = vrcp.pop %v79
      %v81 = vmul.f32 %v77, %v80
      %82 = vst.msk [vmem:[%s2] sm:$0xff] %vm62, %v81
    $region25: #{tpu_custom_call.1} parent=1 // pred_fallthru
      _
    // Predicated region
    $region26: #{tpu_custom_call.1} parent=1 // pred_check
      _
    $region27: #{tpu_custom_call.1} parent=1 // pred_check_branch
      %84 = sbr.rel (0) target = $region29
    $region28: #{tpu_custom_call.1} parent=1 // pred_region
      _
    $region29: #{tpu_custom_call.1} parent=1 // pred_fallthru
      _
    // Predicated region
    $region30: #{tpu_custom_call.1} parent=1 // pred_check
      _
    $region31: #{tpu_custom_call.1} parent=1 // pred_check_branch
      %86 = sbr.rel (0) target = $region33
    $region32: #{tpu_custom_call.1} parent=1 // pred_region
      _
    $region33: #{tpu_custom_call.1} parent=1 // pred_fallthru
      _
    %87 = vsyncpa [#allocation5], 1
    %88 = vsyncpa [#allocation7], 1

</llo_original>
